<compile_context>
chip_gen: v5e
topology: v5e:2x2
jax: 0.10.0
libtpu: 0.0.40
codegen_flags: <defaults>
</compile_context>

<pallas_src>
import functools

import jax
import jax.numpy as jnp
from jax import lax
from jax.experimental import pallas as pl
from jax.experimental.pallas import tpu as pltpu

RECONSTRUCTION_LOSS_WEIGHT = 0.0005
M_PLUS = 0.9
M_MINUS = 0.1
LAMBDA_NEG = 0.5

MAX_TILE_ELEMS = 1 << 20            # elems per pixel block (4 MiB f32 / 2 MiB bf16)
LANE_CANDIDATES = (512, 256, 128)   # lane-dense slab widths (multiples of 128)
DEFAULT_LANE = 512


def _round_up(x, m):
    return (x + m - 1) // m * m


def _sublane_multiple(*dtypes):
    """Second-to-minor tiling multiple: 8 for 4-byte, 16 for 2-byte, 32 for 1-byte."""
    return max(max(8, 32 // dt.itemsize) for dt in dtypes)


def _tensorcores_per_chip():
    """2 TensorCores on v7x; 1 on v5e / v6e (and anything unknown)."""
    try:
        kind = jax.devices()[0].device_kind.lower()
    except Exception:
        return 1
    return 2 if ("v7" in kind or "tpu7" in kind) else 1


def _capsule_loss_kernel(caps_ref, img_ref, rec_ref, out_ref, acc_ref, *,
                         lane, tile_rows, strip_rows, n_inner, rows_valid,
                         rows_covered, inv_n_caps, inv_n_px, recon_weight):
    c = pl.program_id(0)   # core / strip axis
    t = pl.program_id(1)   # pixel-tile reduction axis

    # Reset this strip's lane-wide accumulator.
    @pl.when(t == 0)
    def _init():
        acc_ref[...] = jnp.zeros_like(acc_ref)

    # Per-tile squared error; fold sublane groups with pure VPU adds into (8, lane).
    diff = rec_ref[...].astype(jnp.float32) - img_ref[...].astype(jnp.float32)
    sq = diff * diff

    def _accumulate(vals):
        acc_ref[...] += vals.reshape(tile_rows // 8, 8, lane).sum(axis=0)

    if rows_covered == rows_valid:
        # Every tile is exactly in-bounds: no masking code at all.
        _accumulate(sq)
    else:
        # Only tiles at/after the true end of the slab are ragged; mask their
        # out-of-bounds rows (jnp.where so garbage/NaN never propagates).
        row0 = c * strip_rows + t * tile_rows
        is_ragged = row0 + tile_rows > rows_valid

        @pl.when(jnp.logical_not(is_ragged))
        def _full():
            _accumulate(sq)

        @pl.when(is_ragged)
        def _ragged():
            row_ids = row0 + lax.broadcasted_iota(jnp.int32, sq.shape, 0)
            _accumulate(jnp.where(row_ids < rows_valid, sq, 0.0))

    # Finalize this strip: one cross-lane/sublane reduce for the MSE sum and
    # the (tiny) margin term, which only core 0 contributes.  Broadcast the
    # scalar over the (8,128) output block so the store is unmasked.
    @pl.when(t == n_inner - 1)
    def _fin():
        mse_sum = jnp.sum(acc_ref[...])

        caps = caps_ref[...].astype(jnp.float32)                 # (CAP_DIM, B*NC)
        sq_norm = jnp.sum(caps * caps, axis=0, keepdims=True)    # (1, B*NC)
        v_c = jnp.sqrt(sq_norm)
        pos = jnp.maximum(M_PLUS - v_c, 0.0)
        neg = jnp.maximum(v_c - M_MINUS, 0.0)
        margin_sum = jnp.sum(pos * pos + LAMBDA_NEG * (neg * neg))
        margin_term = jnp.where(c == 0, margin_sum * inv_n_caps, 0.0)

        partial = margin_term + recon_weight * (mse_sum * inv_n_px)
        out_ref[...] = jnp.full((8, 128), partial, dtype=jnp.float32)


def capsule_loss(digit_caps_output, images, reconstructions,
                 reconstruction_loss_weight=RECONSTRUCTION_LOSS_WEIGHT):
    b, num_caps, cap_dim = digit_caps_output.shape
    n_caps = b * num_caps

    # Tiny capsule tensor, lane-dense as (CAP_DIM, B*NUM_CAPS); stays resident
    # across the whole grid (constant block index).
    caps2d = jnp.transpose(digit_caps_output.reshape(n_caps, cap_dim))

    # Lane-dense pixel slabs.  Prefer a lane width that divides the element
    # count so the reshape is free (no HBM copy).
    n_px = int(images.size)
    assert int(reconstructions.size) == n_px

    lane = None
    for cand in LANE_CANDIDATES:
        if n_px % cand == 0:
            lane = cand
            break
    img_flat = images.reshape(-1)
    rec_flat = reconstructions.reshape(-1)
    if lane is None:
        # TODO(synk): a sub-128-element tail still costs one jnp.pad copy of
        # each stream; a separate scalar tail pass would remove it.
        lane = DEFAULT_LANE
        pad = _round_up(n_px, lane) - n_px
        img_flat = jnp.pad(img_flat, (0, pad))
        rec_flat = jnp.pad(rec_flat, (0, pad))
    rows = pl.cdiv(n_px, lane)                      # static
    img2d = img_flat.reshape(rows, lane)
    rec2d = rec_flat.reshape(rows, lane)

    sub = _sublane_multiple(img2d.dtype, rec2d.dtype)
    max_tile_rows = max(sub, MAX_TILE_ELEMS // lane)

    num_cores = _tensorcores_per_chip()
    if num_cores > 1:
        rows_per_core = pl.cdiv(rows, num_cores)
        tile_rows = min(max_tile_rows, _round_up(rows_per_core, sub))
        n_inner = pl.cdiv(rows_per_core, tile_rows)
        # Only keep the second strip if it actually has rows to process.
        if (num_cores - 1) * n_inner * tile_rows >= rows:
            num_cores = 1
    if num_cores == 1:
        tile_rows = min(max_tile_rows, _round_up(rows, sub))
        n_inner = pl.cdiv(rows, tile_rows)
    strip_rows = n_inner * tile_rows
    rows_covered = num_cores * strip_rows
    last_block = pl.cdiv(rows, tile_rows) - 1

    if rows_covered == rows:
        pix_map = lambda c, t: (c * n_inner + t, 0)
    else:
        # Clamp so an overhanging strip block never issues a fully-OOB DMA;
        # such a block is fully masked by the in-kernel row mask anyway.
        pix_map = lambda c, t: (jnp.minimum(c * n_inner + t, last_block), 0)

    kernel = functools.partial(
        _capsule_loss_kernel,
        lane=lane, tile_rows=tile_rows, strip_rows=strip_rows,
        n_inner=n_inner, rows_valid=rows, rows_covered=rows_covered,
        inv_n_caps=1.0 / float(n_caps), inv_n_px=1.0 / float(n_px),
        recon_weight=float(reconstruction_loss_weight),
    )

    # VMEM budget: both pixel streams double-buffered + caps + headroom.
    tile_in_bytes = tile_rows * lane * (img2d.dtype.itemsize + rec2d.dtype.itemsize)
    caps_bytes = int(caps2d.size) * caps2d.dtype.itemsize
    vmem_budget = int(min(max(2 * tile_in_bytes + 2 * caps_bytes + (4 << 20),
                              8 << 20), 40 << 20))

    core_sem = pltpu.CORE_PARALLEL if num_cores > 1 else pltpu.ARBITRARY

    out = pl.pallas_call(
        kernel,
        out_shape=jax.ShapeDtypeStruct((num_cores * 8, 128), jnp.float32),
        grid_spec=pltpu.PrefetchScalarGridSpec(
            num_scalar_prefetch=0,
            grid=(num_cores, n_inner),
            in_specs=[
                # caps: full array, resident across the whole grid
                pl.BlockSpec((cap_dim, n_caps), lambda c, t: (0, 0)),
                # pixel slabs: each core owns a contiguous strip of tiles
                pl.BlockSpec((tile_rows, lane), pix_map),
                pl.BlockSpec((tile_rows, lane), pix_map),
            ],
            out_specs=pl.BlockSpec((8, 128), lambda c, t: (c, 0)),
            scratch_shapes=[pltpu.VMEM((8, lane), jnp.float32)],
        ),
        compiler_params=pltpu.CompilerParams(
            dimension_semantics=(core_sem, pltpu.ARBITRARY),
            vmem_limit_bytes=vmem_budget,
        ),
    )(caps2d, img2d, rec2d)

    # Sum the per-core partials (row 0 of each core's 8x128 block).
    return jnp.sum(out[::8, 0])


def _reference(digit_caps_output, images, reconstructions,
               reconstruction_loss_weight=RECONSTRUCTION_LOSS_WEIGHT):
    v_c = jnp.sqrt(jnp.sum(digit_caps_output.astype(jnp.float32) ** 2, axis=2))
    pos = jnp.maximum(0.9 - v_c, 0.0) ** 2
    neg = jnp.maximum(v_c - 0.1, 0.0) ** 2
    margin = jnp.mean(pos + 0.5 * neg)
    recon = jnp.mean(
        (reconstructions.reshape(reconstructions.shape[0], -1).astype(jnp.float32)
         - images.reshape(images.shape[0], -1).astype(jnp.float32)) ** 2)
    return margin + reconstruction_loss_weight * recon


if __name__ == "__main__":
    key = jax.random.PRNGKey(0)
    k1, k2, k3 = jax.random.split(key, 3)

    B, NUM_CAPS, CAP_DIM = 2, 10, 16
    C, H, W = 4, 16, 16

    digit_caps_output = jax.random.normal(k1, (B, NUM_CAPS, CAP_DIM),
                                          dtype=jnp.float32) * 0.3
    images = jax.random.uniform(k2, (B, C, H, W), dtype=jnp.float32)
    reconstructions = jax.random.uniform(k3, (B, C, H, W), dtype=jnp.float32)

    loss = capsule_loss(digit_caps_output, images, reconstructions)
    loss = jax.block_until_ready(loss)

    ref = _reference(digit_caps_output, images, reconstructions)
    assert jnp.allclose(loss, ref, rtol=1e-5, atol=1e-6), (loss, ref)

    print("KERNEL_OK")
</pallas_src>

<mosaic_0001>
module attributes {stable_mosaic.version = 11 : i64} {
  func.func @_capsule_loss_kernel(%arg0: i32, %arg1: i32, %arg2: memref<16x20xf32, #tpu.memory_space<vmem>>, %arg3: memref<8x512xf32, #tpu.memory_space<vmem>>, %arg4: memref<8x512xf32, #tpu.memory_space<vmem>>, %arg5: memref<8x128xf32, #tpu.memory_space<vmem>>, %arg6: memref<8x512xf32, #tpu.memory_space<vmem>>) attributes {dimension_semantics = [#tpu.dimension_semantics<arbitrary>, #tpu.dimension_semantics<arbitrary>], iteration_bounds = array<i64: 1, 1>, scalar_prefetch = 0 : i64, scratch_operands = 1 : i64, tpu.core_type = #tpu.core_type<tc>, window_params = [{pipeline_mode = #tpu.pipeline_mode<synchronous>, transform_indices = @transform_0, window_bounds = array<i64: 16, 20>}, {transform_indices = @transform_1, window_bounds = array<i64: 8, 512>}, {transform_indices = @transform_2, window_bounds = array<i64: 8, 512>}, {transform_indices = @transform_3, window_bounds = array<i64: 8, 128>}]} {
    %c0_i32 = arith.constant 0 : i32
    %0 = arith.cmpi eq, %arg1, %c0_i32 : i32
    %1 = arith.extui %0 : i1 to i32
    %c0_i32_0 = arith.constant 0 : i32
    %2 = arith.cmpi ne, %1, %c0_i32_0 : i32
    scf.if %2 {
      %cst = arith.constant 0.000000e+00 : f32
      %20 = vector.broadcast %cst : f32 to vector<8x512xf32>
      %c0_10 = arith.constant 0 : index
      %c0_11 = arith.constant 0 : index
      %21 = vector.load %arg6[%c0_10, %c0_11] : memref<8x512xf32, #tpu.memory_space<vmem>>, vector<8x512xf32>
      tpu.vector_store %arg6[%c0_10, %c0_11], %20 {strides = array<i32>} : memref<8x512xf32, #tpu.memory_space<vmem>>, vector<8x512xf32>,
    } else {
    }
    %c0 = arith.constant 0 : index
    %c0_1 = arith.constant 0 : index
    %3 = vector.load %arg4[%c0, %c0_1] : memref<8x512xf32, #tpu.memory_space<vmem>>, vector<8x512xf32>
    %c0_2 = arith.constant 0 : index
    %c0_3 = arith.constant 0 : index
    %4 = vector.load %arg3[%c0_2, %c0_3] : memref<8x512xf32, #tpu.memory_space<vmem>>, vector<8x512xf32>
    %5 = arith.subf %3, %4 : vector<8x512xf32>
    %6 = arith.mulf %5, %5 : vector<8x512xf32>
    %c8_i32 = arith.constant 8 : i32
    %7 = arith.muli %arg0, %c8_i32 : i32
    %c8_i32_4 = arith.constant 8 : i32
    %8 = arith.muli %arg1, %c8_i32_4 : i32
    %9 = arith.addi %7, %8 : i32
    %c8_i32_5 = arith.constant 8 : i32
    %10 = arith.addi %9, %c8_i32_5 : i32
    %c4_i32 = arith.constant 4 : i32
    %11 = arith.cmpi sgt, %10, %c4_i32 : i32
    %true = arith.constant true
    %12 = arith.xori %11, %true : i1
    %13 = arith.extui %12 : i1 to i32
    %c0_i32_6 = arith.constant 0 : i32
    %14 = arith.cmpi ne, %13, %c0_i32_6 : i32
    scf.if %14 {
      %c0_10 = arith.constant 0 : index
      %c0_11 = arith.constant 0 : index
      %20 = vector.load %arg6[%c0_10, %c0_11] : memref<8x512xf32, #tpu.memory_space<vmem>>, vector<8x512xf32>
      %21 = vector.shape_cast %6 : vector<8x512xf32> to vector<1x8x512xf32>
      %cst = arith.constant dense<0.000000e+00> : vector<8x512xf32>
      %22 = vector.multi_reduction <add>, %21, %cst [0] : vector<1x8x512xf32> to vector<8x512xf32>
      %23 = arith.addf %20, %22 : vector<8x512xf32>
      %c0_12 = arith.constant 0 : index
      %c0_13 = arith.constant 0 : index
      %24 = vector.load %arg6[%c0_12, %c0_13] : memref<8x512xf32, #tpu.memory_space<vmem>>, vector<8x512xf32>
      tpu.vector_store %arg6[%c0_12, %c0_13], %23 {strides = array<i32>} : memref<8x512xf32, #tpu.memory_space<vmem>>, vector<8x512xf32>,
    } else {
    }
    %15 = arith.extui %11 : i1 to i32
    %c0_i32_7 = arith.constant 0 : i32
    %16 = arith.cmpi ne, %15, %c0_i32_7 : i32
    scf.if %16 {
      %20 = tpu.iota {dimensions = array<i32: 0>} : vector<8x512xi32>
      %21 = vector.broadcast %9 : i32 to vector<8x512xi32>
      %22 = arith.addi %21, %20 : vector<8x512xi32>
      %c4_i32_10 = arith.constant 4 : i32
      %23 = vector.broadcast %c4_i32_10 : i32 to vector<8x512xi32>
      %24 = arith.cmpi slt, %22, %23 : vector<8x512xi32>
      %cst = arith.constant 0.000000e+00 : f32
      %25 = vector.broadcast %cst : f32 to vector<8x512xf32>
      %26 = arith.select %24, %6, %25 : vector<8x512xi1>, vector<8x512xf32>
      %c0_11 = arith.constant 0 : index
      %c0_12 = arith.constant 0 : index
      %27 = vector.load %arg6[%c0_11, %c0_12] : memref<8x512xf32, #tpu.memory_space<vmem>>, vector<8x512xf32>
      %28 = vector.shape_cast %26 : vector<8x512xf32> to vector<1x8x512xf32>
      %cst_13 = arith.constant dense<0.000000e+00> : vector<8x512xf32>
      %29 = vector.multi_reduction <add>, %28, %cst_13 [0] : vector<1x8x512xf32> to vector<8x512xf32>
      %30 = arith.addf %27, %29 : vector<8x512xf32>
      %c0_14 = arith.constant 0 : index
      %c0_15 = arith.constant 0 : index
      %31 = vector.load %arg6[%c0_14, %c0_15] : memref<8x512xf32, #tpu.memory_space<vmem>>, vector<8x512xf32>
      tpu.vector_store %arg6[%c0_14, %c0_15], %30 {strides = array<i32>} : memref<8x512xf32, #tpu.memory_space<vmem>>, vector<8x512xf32>,
    } else {
    }
    %c0_i32_8 = arith.constant 0 : i32
    %17 = arith.cmpi eq, %arg1, %c0_i32_8 : i32
    %18 = arith.extui %17 : i1 to i32
    %c0_i32_9 = arith.constant 0 : i32
    %19 = arith.cmpi ne, %18, %c0_i32_9 : i32
    scf.if %19 {
      %c0_10 = arith.constant 0 : index
      %c0_11 = arith.constant 0 : index
      %20 = vector.load %arg6[%c0_10, %c0_11] : memref<8x512xf32, #tpu.memory_space<vmem>>, vector<8x512xf32>
      %21 = vector.shape_cast %20 : vector<8x512xf32> to vector<1x8x512xf32>
      %cst = arith.constant dense<0.000000e+00> : vector<1xf32>
      %22 = vector.multi_reduction <add>, %21, %cst [1, 2] : vector<1x8x512xf32> to vector<1xf32>
      %23 = vector.shape_cast %22 : vector<1xf32> to vector<1x1x1xf32>
      %24 = vector.extract %23[0, 0, 0] : f32 from vector<1x1x1xf32>
      %c0_12 = arith.constant 0 : index
      %c0_13 = arith.constant 0 : index
      %25 = vector.load %arg2[%c0_12, %c0_13] : memref<16x20xf32, #tpu.memory_space<vmem>>, vector<16x20xf32>
      %26 = arith.mulf %25, %25 : vector<16x20xf32>
      %cst_14 = arith.constant dense<0.000000e+00> : vector<20xf32>
      %27 = vector.multi_reduction <add>, %26, %cst_14 [0] : vector<16x20xf32> to vector<20xf32>
      %28 = vector.shape_cast %27 : vector<20xf32> to vector<1x20xf32>
      %29 = math.sqrt %28 : vector<1x20xf32>
      %cst_15 = arith.constant 0.899999976 : f32
      %30 = vector.broadcast %cst_15 : f32 to vector<1x20xf32>
      %31 = arith.subf %30, %29 : vector<1x20xf32>
      %cst_16 = arith.constant 0.000000e+00 : f32
      %32 = vector.broadcast %cst_16 : f32 to vector<1x20xf32>
      %33 = arith.maximumf %31, %32 : vector<1x20xf32>
      %cst_17 = arith.constant 1.000000e-01 : f32
      %34 = vector.broadcast %cst_17 : f32 to vector<1x20xf32>
      %35 = arith.subf %29, %34 : vector<1x20xf32>
      %cst_18 = arith.constant 0.000000e+00 : f32
      %36 = vector.broadcast %cst_18 : f32 to vector<1x20xf32>
      %37 = arith.maximumf %35, %36 : vector<1x20xf32>
      %38 = arith.mulf %33, %33 : vector<1x20xf32>
      %39 = arith.mulf %37, %37 : vector<1x20xf32>
      %cst_19 = arith.constant 5.000000e-01 : f32
      %40 = vector.broadcast %cst_19 : f32 to vector<1x20xf32>
      %41 = arith.mulf %40, %39 : vector<1x20xf32>
      %42 = arith.addf %38, %41 : vector<1x20xf32>
      %43 = vector.shape_cast %42 : vector<1x20xf32> to vector<1x1x20xf32>
      %cst_20 = arith.constant dense<0.000000e+00> : vector<1xf32>
      %44 = vector.multi_reduction <add>, %43, %cst_20 [1, 2] : vector<1x1x20xf32> to vector<1xf32>
      %45 = vector.shape_cast %44 : vector<1xf32> to vector<1x1x1xf32>
      %46 = vector.extract %45[0, 0, 0] : f32 from vector<1x1x1xf32>
      %c0_i32_21 = arith.constant 0 : i32
      %47 = arith.cmpi eq, %arg0, %c0_i32_21 : i32
      %cst_22 = arith.constant 5.000000e-02 : f32
      %48 = arith.mulf %46, %cst_22 : f32
      %cst_23 = arith.constant 0.000000e+00 : f32
      %49 = arith.select %47, %48, %cst_23 : f32
      %cst_24 = arith.constant 4.8828125E-4 : f32
      %50 = arith.mulf %24, %cst_24 : f32
      %cst_25 = arith.constant 5.000000e-04 : f32
      %51 = arith.mulf %cst_25, %50 : f32
      %52 = arith.addf %49, %51 : f32
      %53 = vector.broadcast %52 : f32 to vector<8x128xf32>
      %c0_26 = arith.constant 0 : index
      %c0_27 = arith.constant 0 : index
      %54 = vector.load %arg5[%c0_26, %c0_27] : memref<8x128xf32, #tpu.memory_space<vmem>>, vector<8x128xf32>
      tpu.vector_store %arg5[%c0_26, %c0_27], %53 {strides = array<i32>} : memref<8x128xf32, #tpu.memory_space<vmem>>, vector<8x128xf32>,
    } else {
    }
    return
  }
  func.func @transform_0(%arg0: i32, %arg1: i32) -> (i32, i32) {
    %c0_i32 = arith.constant 0 : i32
    %c0_i32_0 = arith.constant 0 : i32
    %c0_i32_1 = arith.constant 0 : i32
    return %c0_i32, %c0_i32_0 : i32, i32
  }
  func.func @transform_1(%arg0: i32, %arg1: i32) -> (i32, i32) {
    %c1_i32 = arith.constant 1 : i32
    %0 = arith.muli %arg0, %c1_i32 : i32
    %1 = arith.addi %0, %arg1 : i32
    %c0_i32 = arith.constant 0 : i32
    %2 = arith.minsi %1, %c0_i32 : i32
    %c0_i32_0 = arith.constant 0 : i32
    %c0_i32_1 = arith.constant 0 : i32
    return %2, %c0_i32_0 : i32, i32
  }
  func.func @transform_2(%arg0: i32, %arg1: i32) -> (i32, i32) {
    %c1_i32 = arith.constant 1 : i32
    %0 = arith.muli %arg0, %c1_i32 : i32
    %1 = arith.addi %0, %arg1 : i32
    %c0_i32 = arith.constant 0 : i32
    %2 = arith.minsi %1, %c0_i32 : i32
    %c0_i32_0 = arith.constant 0 : i32
    %c0_i32_1 = arith.constant 0 : i32
    return %2, %c0_i32_0 : i32, i32
  }
  func.func @transform_3(%arg0: i32, %arg1: i32) -> (i32, i32) {
    %c0_i32 = arith.constant 0 : i32
    %c0_i32_0 = arith.constant 0 : i32
    return %arg0, %c0_i32 : i32, i32
  }
}

</mosaic_0001>

<llo_original>
// kernel: tpu_custom_call.1
$region0: #{tpu_custom_call.1}
  #allocation0 [shape = 'u32[]', space=smem, size = 0x4, offset = 0x4, fixed_abs, tag = 'smem constant byte address 0x4 - core index']
  #allocation1 [shape = 'u32[72,128]{1,0:T(1,128)}', space=vmem, size = 0x9000, scoped, tag = 'internal scratch']
  #allocation2 [shape = 'f32[8,512]{1,0:T(8,128)}', space=vmem, size = 0x4000, scoped, tag = 'scratch operand']
  %s0 = inlined_call_operand.hbm [shape: f32[16,20], index: 0, kind: input, shape index: {}]
  %s1 = inlined_call_operand.hbm [shape: f32[4,512], index: 1, kind: input, shape index: {}]
  %s2 = inlined_call_operand.hbm [shape: f32[4,512], index: 2, kind: input, shape index: {}]
  %s3 = inlined_call_operand.hbm [shape: f32[8,128], index: 3, kind: output, shape index: {}]
  %s4 = sld [smem:[#allocation0]]
  $region50: #{tpu_custom_call.1} parent=0
    _
  %s6 = ssub.s32 1, %s4
  %s7 = scalar_select 0, %s6, %s4
  $region1: #{tpu_custom_call.1} parent=0
    #allocation3 [shape = 'u8[8192]{0}', space=vmem, size = 0x2000, scoped, tag = 'input window, operand 0, single buffered']
    #allocation4 [shape = 's32[1]{0}', space=sflag, size = 0x4, scoped, tag = 'scoped memory for tpu_custom_call.1']
    #allocation5 [shape = 's32[1]{0}', space=sflag, size = 0x4, scoped, tag = 'scoped memory for tpu_custom_call.1']
    #allocation6 [shape = 'u8[16384]{0}', space=vmem, size = 0x4000, scoped, tag = 'input window, operand 1, single buffered']
    #allocation7 [shape = 's32[1]{0}', space=sflag, size = 0x4, scoped, tag = 'scoped memory for tpu_custom_call.1']
    #allocation8 [shape = 'u8[16384]{0}', space=vmem, size = 0x4000, scoped, tag = 'input window, operand 2, single buffered']
    #allocation9 [shape = 'u8[4096]{0}', space=vmem, size = 0x1000, scoped, tag = 'output window, operand 0, single buffered']
    %8 = vsyncpa [#allocation4], 0
    %9 = vsyncpa [#allocation7], 0
    %10 = vsyncpa [#allocation5], 0
    // Predicated region
    $region2: #{tpu_custom_call.1} parent=1 // pred_check
      _
    $region3: #{tpu_custom_call.1} parent=1 // pred_check_branch
      %12 = sbr.rel (0) target = $region5
    $region4: #{tpu_custom_call.1} parent=1 // pred_region
      %14 = vsyncadd [#allocation4], 0
      %s15 = sshll.u32 %s0, 4
      %s16 = int_to_ptr.hbm [resolvable:$true] %s15
      %s17 = sshll.u32 [#allocation3], 4
      %s18 = int_to_ptr.vmem [resolvable:$true] %s17
      %23 = dma.hbm_to_vmem [thread:$0]  %s16, 256, %s18, [#allocation4], 128, 128, 8
    $region5: #{tpu_custom_call.1} parent=1 // pred_fallthru
      _
    // Predicated region
    $region6: #{tpu_custom_call.1} parent=1 // pred_check
      _
    $region7: #{tpu_custom_call.1} parent=1 // pred_check_branch
      %25 = sbr.rel (0) target = $region9
    $region8: #{tpu_custom_call.1} parent=1 // pred_region
      %s26 = sadd.s32 0, 0
      %p27 = scmp.lt.s32.totalorder %s26, 0
      %s28 = scalar_select %p27, %s26, 0
      %s29 = smul.u32 2, %s28
      %s30 = ssub.s32 1, %s29
      %s31 = smul.u32 4, %s30
      %s32 = smul.u32 %s31, 4
      %s33 = ssub.s32 32, %s32
      %s34 = sshll.u32 %s33, 4
      %35 = vsyncadd [#allocation7], %s34
      %p36 = scmp.ne.s32.totalorder 0, %s32
      %s37 = smul.addr %s29, 4
      %s38 = smul.addr %s37, 4
      %s39 = scalar_lea.hbm %s1, %s38
      %s40 = smul.u32 16, %s30
      %s41 = sshll.u32 %s39, 4
      %s42 = int_to_ptr.hbm [resolvable:$true] %s41
      %s43 = sshll.u32 [#allocation6], 4
      %s44 = int_to_ptr.vmem [resolvable:$true] %s43
      %s45 = sshll.u32 %s40, 4
      %49 = dma.hbm_to_vmem [thread:$0]  (%p36), %s42, %s45, %s44, [#allocation7], 256, 256, 16
    $region9: #{tpu_custom_call.1} parent=1 // pred_fallthru
      _
    // Predicated region
    $region10: #{tpu_custom_call.1} parent=1 // pred_check
      _
    $region11: #{tpu_custom_call.1} parent=1 // pred_check_branch
      %51 = sbr.rel (0) target = $region13
    $region12: #{tpu_custom_call.1} parent=1 // pred_region
      %s52 = sadd.s32 0, 0
      %p53 = scmp.lt.s32.totalorder %s52, 0
      %s54 = scalar_select %p53, %s52, 0
      %s55 = smul.u32 2, %s54
      %s56 = ssub.s32 1, %s55
      %s57 = smul.u32 4, %s56
      %s58 = smul.u32 %s57, 4
      %s59 = ssub.s32 32, %s58
      %s60 = sshll.u32 %s59, 4
      %61 = vsyncadd [#allocation7], %s60
      %p62 = scmp.ne.s32.totalorder 0, %s58
      %s63 = smul.addr %s55, 4
      %s64 = smul.addr %s63, 4
      %s65 = scalar_lea.hbm %s2, %s64
      %s66 = smul.u32 16, %s56
      %s67 = sshll.u32 %s65, 4
      %s68 = int_to_ptr.hbm [resolvable:$true] %s67
      %s69 = sshll.u32 [#allocation8], 4
      %s70 = int_to_ptr.vmem [resolvable:$true] %s69
      %s71 = sshll.u32 %s66, 4
      %75 = dma.hbm_to_vmem [thread:$0]  (%p62), %s68, %s71, %s70, [#allocation7], 256, 256, 16
    $region13: #{tpu_custom_call.1} parent=1 // pred_fallthru
      _
    // Predicated region
    $region14: #{tpu_custom_call.1} parent=1 // pred_check
      _
    $region15: #{tpu_custom_call.1} parent=1 // pred_check_branch
      %77 = sbr.rel (0) target = $region17
    $region16: #{tpu_custom_call.1} parent=1 // pred_region
      %79 = dma.done [#allocation4], 256
    $region17: #{tpu_custom_call.1} parent=1 // pred_fallthru
      _
    // Predicated region
    $region18: #{tpu_custom_call.1} parent=1 // pred_check
      _
    $region19: #{tpu_custom_call.1} parent=1 // pred_check_branch
      %81 = sbr.rel (0) target = $region21
    $region20: #{tpu_custom_call.1} parent=1 // pred_region
      %83 = dma.done [#allocation7], 512
    $region21: #{tpu_custom_call.1} parent=1 // pred_fallthru
      _
    // Predicated region
    $region22: #{tpu_custom_call.1} parent=1 // pred_check
      _
    $region23: #{tpu_custom_call.1} parent=1 // pred_check_branch
      %85 = sbr.rel (0) target = $region25
    $region24: #{tpu_custom_call.1} parent=1 // pred_region
      %87 = dma.done [#allocation7], 512
    $region25: #{tpu_custom_call.1} parent=1 // pred_fallthru
      _
    %s88 = sadd.s32 0, 0
    %p89 = scmp.lt.s32.totalorder %s88, 0
    %s90 = scalar_select %p89, %s88, 0
    %s91 = smul.u32 2, %s90
    %s92 = ssub.s32 1, %s91
    %s93 = smul.u32 4, %s92
    %s94 = smul.u32 %s93, 4
    %s95 = sadd.s32 0, 0
    %p96 = scmp.lt.s32.totalorder %s95, 0
    %s97 = scalar_select %p96, %s95, 0
    %s98 = smul.u32 2, %s97
    %s99 = ssub.s32 1, %s98
    %s100 = smul.u32 4, %s99
    %s101 = smul.u32 %s100, 4
    %p102 = scmp.eq.s32.totalorder 0, 0
    // Predicated region
    $region26: #{tpu_custom_call.1} parent=1 // pred_check
      %p103 = pneg %p102
    $region27: #{tpu_custom_call.1} parent=1 // pred_check_branch
      %105 = sbr.rel (%p103) target = $region29
    $region28: #{tpu_custom_call.1} parent=1 // pred_region
      %106 = vst [vmem:[#allocation2] sm:$0xff] 0.0
      %107 = vst [vmem:[#allocation2 + $0x8] sm:$0xff] 0.0
      %108 = vst [vmem:[#allocation2 + $0x10] sm:$0xff] 0.0
      %109 = vst [vmem:[#allocation2 + $0x18] sm:$0xff] 0.0
    $region29: #{tpu_custom_call.1} parent=1 // pred_fallthru
      _
    %v110 = vld [vmem:[#allocation8] sm:$0xff]
    %v111 = vld [vmem:[#allocation8 + $0x8] sm:$0xff]
    %v112 = vld [vmem:[#allocation8 + $0x10] sm:$0xff]
    %v113 = vld [vmem:[#allocation8 + $0x18] sm:$0xff]
    %v114 = vld [vmem:[#allocation6] sm:$0xff]
    %v115 = vld [vmem:[#allocation6 + $0x8] sm:$0xff]
    %v116 = vld [vmem:[#allocation6 + $0x10] sm:$0xff]
    %v117 = vld [vmem:[#allocation6 + $0x18] sm:$0xff]
    %v118 = vsub.f32 %v110, %v114
    %v119 = vsub.f32 %v111, %v115
    %v120 = vsub.f32 %v112, %v116
    %v121 = vsub.f32 %v113, %v117
    %v122 = vmul.f32 %v118, %v118
    %v123 = vmul.f32 %v119, %v119
    %v124 = vmul.f32 %v120, %v120
    %v125 = vmul.f32 %v121, %v121
    %s126 = smul.u32 0, 8
    %s127 = smul.u32 0, 8
    %s128 = sadd.s32 %s126, %s127
    %s129 = sadd.s32 %s128, 8
    %p130 = scmp.gt.s32.totalorder %s129, 4
    %p131 = scmp.le.s32.totalorder %s129, 4
    // Predicated region
    $region30: #{tpu_custom_call.1} parent=1 // pred_check
      %p132 = pneg %p131
    $region31: #{tpu_custom_call.1} parent=1 // pred_check_branch
      %134 = sbr.rel (%p132) target = $region33
    $region32: #{tpu_custom_call.1} parent=1 // pred_region
      %v135 = vld [vmem:[#allocation2] sm:$0xff]
      %v136 = vld [vmem:[#allocation2 + $0x8] sm:$0xff]
      %v137 = vld [vmem:[#allocation2 + $0x10] sm:$0xff]
      %v138 = vld [vmem:[#allocation2 + $0x18] sm:$0xff]
      %v139 = vadd.f32 %v122, 0.0
      %v140 = vadd.f32 %v123, 0.0
      %v141 = vadd.f32 %v124, 0.0
      %v142 = vadd.f32 %v125, 0.0
      %147 = vst [vmem:[#allocation1] ss:$2 sm:$0xff] %v139
      %s148 = scalar_lea.vmem [#allocation1], 1
      %149 = vst [vmem:[%s148] ss:$2 sm:$0xff] %v141
      %s150 = scalar_lea.vmem [#allocation1], 16
      %151 = vst [vmem:[%s150] ss:$2 sm:$0xff] %v140
      %s152 = scalar_lea.vmem [#allocation1], 17
      %153 = vst [vmem:[%s152] ss:$2 sm:$0xff] %v142
      %v154 = vld.sshfl [vmem:[#allocation1] sm:$0xff pattern:$0x75316420]
      %v155 = vld.sshfl [vmem:[#allocation1 + $0x8] sm:$0xff pattern:$0x75316420]
      %v156 = vld.sshfl [vmem:[#allocation1 + $0x10] sm:$0xff pattern:$0x75316420]
      %v157 = vld.sshfl [vmem:[#allocation1 + $0x18] sm:$0xff pattern:$0x75316420]
      %v162 = vadd.f32 %v135, %v154
      %v163 = vadd.f32 %v136, %v155
      %v164 = vadd.f32 %v137, %v156
      %v165 = vadd.f32 %v138, %v157
      %166 = vst [vmem:[#allocation2] sm:$0xff] %v162
      %167 = vst [vmem:[#allocation2 + $0x8] sm:$0xff] %v163
      %168 = vst [vmem:[#allocation2 + $0x10] sm:$0xff] %v164
      %169 = vst [vmem:[#allocation2 + $0x18] sm:$0xff] %v165
    $region33: #{tpu_custom_call.1} parent=1 // pred_fallthru
      _
    // Predicated region
    $region34: #{tpu_custom_call.1} parent=1 // pred_check
      %p170 = pneg %p130
    $region35: #{tpu_custom_call.1} parent=1 // pred_check_branch
      %172 = sbr.rel (%p170) target = $region37
    $region36: #{tpu_custom_call.1} parent=1 // pred_region
      %v173 = vlaneseq
      %v174 = vshrl.u32 %v173, 7
      %v175 = vstv %s128
      %v176 = vadd.s32 %v175, %v174
      %vm177 = vcmp.lt.s32.totalorder %v176, 4
      %182 = vst [vmem:[#allocation1] ss:$2 sm:$0xff] %v122
      %s183 = scalar_lea.vmem [#allocation1], 1
      %184 = vst [vmem:[%s183] ss:$2 sm:$0xff] %v124
      %s185 = scalar_lea.vmem [#allocation1], 16
      %186 = vst [vmem:[%s185] ss:$2 sm:$0xff] %v123
      %s187 = scalar_lea.vmem [#allocation1], 17
      %188 = vst [vmem:[%s187] ss:$2 sm:$0xff] %v125
      %v189 = vld.sshfl [vmem:[#allocation1] sm:$0xff pattern:$0x75316420]
      %v190 = vld.sshfl [vmem:[#allocation1 + $0x8] sm:$0xff pattern:$0x75316420]
      %v191 = vld.sshfl [vmem:[#allocation1 + $0x10] sm:$0xff pattern:$0x75316420]
      %v192 = vld.sshfl [vmem:[#allocation1 + $0x18] sm:$0xff pattern:$0x75316420]
      %v197 = vsel %vm177, %v189, 0.0
      %v198 = vsel %vm177, %v190, 0.0
      %v199 = vsel %vm177, %v191, 0.0
      %v200 = vsel %vm177, %v192, 0.0
      %v201 = vld [vmem:[#allocation2] sm:$0xff]
      %v202 = vld [vmem:[#allocation2 + $0x8] sm:$0xff]
      %v203 = vld [vmem:[#allocation2 + $0x10] sm:$0xff]
      %v204 = vld [vmem:[#allocation2 + $0x18] sm:$0xff]
      %v205 = vadd.f32 %v197, 0.0
      %v206 = vadd.f32 %v198, 0.0
      %v207 = vadd.f32 %v199, 0.0
      %v208 = vadd.f32 %v200, 0.0
      %v209 = vadd.f32 %v201, %v205
      %v210 = vadd.f32 %v202, %v206
      %v211 = vadd.f32 %v203, %v207
      %v212 = vadd.f32 %v204, %v208
      %213 = vst [vmem:[#allocation2] sm:$0xff] %v209
      %214 = vst [vmem:[#allocation2 + $0x8] sm:$0xff] %v210
      %215 = vst [vmem:[#allocation2 + $0x10] sm:$0xff] %v211
      %216 = vst [vmem:[#allocation2 + $0x18] sm:$0xff] %v212
    $region37: #{tpu_custom_call.1} parent=1 // pred_fallthru
      _
    // Predicated region
    $region38: #{tpu_custom_call.1} parent=1 // pred_check
      %p217 = pneg %p102
    $region39: #{tpu_custom_call.1} parent=1 // pred_check_branch
      %219 = sbr.rel (%p217) target = $region41
    $region40: #{tpu_custom_call.1} parent=1 // pred_region
      %v220 = vld [vmem:[#allocation2] sm:$0xff]
      %v221 = vld [vmem:[#allocation2 + $0x8] sm:$0xff]
      %v222 = vld [vmem:[#allocation2 + $0x10] sm:$0xff]
      %v223 = vld [vmem:[#allocation2 + $0x18] sm:$0xff]
      %v224 = vadd.f32 %v220, %v221
      %v225 = vadd.f32 %v224, %v222
      %v226 = vadd.f32 %v225, %v223
      %227 = vadd.xlane.f32.xlu0 %v226
      %v228 = vpop.xlane.xlu0 %227
      %v229 = vrot.slane %v228, 4
      %v230 = vadd.f32 %v228, %v229
      %v231 = vrot.slane %v230, 2
      %v232 = vadd.f32 %v230, %v231
      %v233 = vrot.slane %v232, 1
      %v234 = vadd.f32 %v232, %v233
      %s235 = vtos %v234
      %v236 = vld [vmem:[#allocation3] sm:$0xff]
      %v237 = vld [vmem:[#allocation3 + $0x8] sm:$0xff]
      %v238 = vmul.f32 %v236, %v236
      %v239 = vmul.f32 %v237, %v237
      %vm240 = vcmask 162816
      %v241 = vsel %vm240, %v238, 0.0
      %v242 = vsel %vm240, %v239, 0.0
      %v243 = vadd.f32 %v241, %v242
      %v244 = vrot.slane %v243, 4
      %v245 = vadd.f32 %v243, %v244
      %v246 = vrot.slane %v245, 2
      %v247 = vadd.f32 %v245, %v246
      %v248 = vrot.slane %v247, 1
      %v249 = vadd.f32 %v247, %v248
      %v250 = vrsqrt.pop %v249
      %v251 = vmul.f32 %v250, %v249
      %v252 = vmul.f32 %v251, %v250
      %v253 = vmul.f32 0.5, %v252
      %v254 = vsub.f32 1.5, %v253
      %v255 = vmul.f32 %v250, %v254
      %v256 = vmul.f32 %v249, %v255
      %vm257 = vcmp.eq.f32.partialorder %v249, inf
      %v258 = vsel %vm257, %v249, %v256
      %vm259 = vcmp.eq.f32.partialorder %v249, 0.0
      %v260 = vand.u32 %v249, 2147483648
      %v261 = vsel %vm259, %v260, %v258
      %v262 = vsub.f32 0.9, %v261
      %v263 = vmax.f32 %v262, 0.0
      %v264 = vsub.f32 %v261, 0.1
      %v265 = vmax.f32 %v264, 0.0
      %v266 = vmul.f32 %v263, %v263
      %v267 = vmul.f32 %v265, %v265
      %v268 = vmul.f32 %v267, 0.5
      %v269 = vadd.f32 %v266, %v268
      %vm270 = vcmask 155648
      %v271 = vsel %vm270, %v269, 0.0
      %272 = vadd.xlane.f32.xlu0 %v271
      %v273 = vpop.xlane.xlu0 %272
      %v274 = vrot.slane %v273, 4
      %v275 = vadd.f32 %v273, %v274
      %v276 = vrot.slane %v275, 2
      %v277 = vadd.f32 %v275, %v276
      %v278 = vrot.slane %v277, 1
      %v279 = vadd.f32 %v277, %v278
      %s280 = vtos %v279
      %p281 = scmp.eq.s32.totalorder 0, 0
      %s282 = smul.f32 %s280, 0.05
      %s283 = scalar_select %p281, %s282, 0.0
      %s284 = smul.f32 %s235, 0.00048828125
      %s285 = smul.f32 %s284, 0.0005
      %s286 = sadd.f32 %s283, %s285
      %v287 = vstv %s286
      %288 = vst [vmem:[#allocation9] sm:$0xff] %v287
    $region41: #{tpu_custom_call.1} parent=1 // pred_fallthru
      _
    // Predicated region
    $region42: #{tpu_custom_call.1} parent=1 // pred_check
      _
    $region43: #{tpu_custom_call.1} parent=1 // pred_check_branch
      %290 = sbr.rel (0) target = $region45
    $region44: #{tpu_custom_call.1} parent=1 // pred_region
      %292 = vsyncadd [#allocation5], 0
      %s294 = sshll.u32 [#allocation9], 4
      %s295 = int_to_ptr.vmem [resolvable:$true] %s294
      %s296 = sshll.u32 %s3, 4
      %s297 = int_to_ptr.hbm [resolvable:$true] %s296
      %299 = dma.vmem_to_hbm [thread:$0]  %s295, 128, %s297, [#allocation5]
    $region45: #{tpu_custom_call.1} parent=1 // pred_fallthru
      _
    // Predicated region
    $region46: #{tpu_custom_call.1} parent=1 // pred_check
      _
    $region47: #{tpu_custom_call.1} parent=1 // pred_check_branch
      %301 = sbr.rel (0) target = $region49
    $region48: #{tpu_custom_call.1} parent=1 // pred_region
      %303 = dma.done [#allocation5], 128
    $region49: #{tpu_custom_call.1} parent=1 // pred_fallthru
      _
    %304 = vsyncpa [#allocation4], 1
    %305 = vsyncpa [#allocation7], 1
    %306 = vsyncpa [#allocation5], 1

</llo_original>
